<compile_context>
chip_gen: v6e
topology: v6e:2x2x1
jax: 0.10.0
libtpu: 0.0.40
codegen_flags: <defaults>
</compile_context>

<pallas_src>
import jax
import jax.numpy as jnp
from jax import lax
from jax.experimental import pallas as pl
from jax.experimental.pallas import tpu as pltpu


def _decoder_lin_kernel(x_ref, w_ref, ms_ref, ym_ref):
    # x:(tb,L), w:(tf,L) -> (tb,tf): contract L on the MXU (f32 accumulation);
    # the rhs "transpose" is expressed via dimension_numbers, not a wrapper op.
    y = lax.dot_general(
        x_ref[...], w_ref[...],
        dimension_numbers=(((1,), (1,)), ((), ())),
        preferred_element_type=jnp.float32,
    )
    mean = ms_ref[0:1, :]          # (1, tf), broadcast over batch rows
    std = ms_ref[1:2, :]
    ym_ref[...] = (y * std + mean).astype(ym_ref.dtype)


def decoder_lin_forward(x, embed, mean, std, var_param, *, var_eps: float = 1e-4,
                        block_b: int | None = None, block_f: int | None = None):
    """x: (B, L), embed: (F, L), mean/std: (F,), var_param: (1, F)."""
    B, L = x.shape
    F, L2 = embed.shape
    assert L == L2

    out_dtype = x.dtype

    # ---- per-generation VMEM budget (v7x: 64 MiB, v5e/v6e: 128 MiB) --------
    try:
        info = pltpu.get_tpu_info()
        vmem_cap = int(getattr(info, "vmem_capacity_bytes", 64 << 20))
    except Exception:  # be conservative if the query is unavailable
        vmem_cap = 64 << 20
    vmem_budget = min(vmem_cap * 3 // 4, 100 << 20)   # ~48 MiB v7x, ~96 MiB v5e/v6e

    if block_b is None:
        block_b = 512
    if block_f is None:
        # Wide lane-dense output tiles; v5e/v6e can afford 2048, v7x stays at 1024.
        block_f = 2048 if vmem_cap >= (96 << 20) else 1024

    tb = B if B <= block_b else block_b            # multiple of 8 when tiled
    tf = F if F <= block_f else block_f            # multiple of 128 when tiled

    x_isz = jnp.dtype(x.dtype).itemsize
    w_isz = jnp.dtype(embed.dtype).itemsize
    o_isz = jnp.dtype(out_dtype).itemsize

    def footprint(tb_, tf_):
        # double-buffered tiles + ~25% headroom
        per_step = (tb_ * L * x_isz + tf_ * L * w_isz + 2 * tf_ * 4 + tb_ * tf_ * o_isz)
        return int(2.5 * per_step)

    # Shrink tiled dims (never below alignment) instead of blowing the budget.
    while footprint(tb, tf) > vmem_budget:
        if tf < F and tf > 256:
            tf //= 2                               # stays a multiple of 128
        elif tb < B and tb > 8:
            tb //= 2                               # stays a multiple of 8
        else:
            break

    vmem_limit = int(min(max(footprint(tb, tf), 8 << 20), vmem_budget))

    # F-tiles lead the grid: guarantees >=2 leading iterations for 2-TC sharding
    # when F > tf, and keeps weight/param block indices constant across the
    # inner batch loop (Pallas skips their re-fetch), so only the tiny x tile
    # is re-streamed per step.
    grid = (pl.cdiv(F, tf), pl.cdiv(B, tb))

    ms = jnp.stack([mean, std]).reshape(2, F).astype(jnp.float32)   # [mean; std]

    cost = pl.CostEstimate(
        flops=2 * B * F * L,
        transcendentals=0,
        bytes_accessed=(B * L * x_isz + F * L * w_isz + 2 * F * 4 + B * F * o_isz),
    )

    y_m = pl.pallas_call(
        _decoder_lin_kernel,
        out_shape=jax.ShapeDtypeStruct((B, F), out_dtype),
        grid=grid,
        in_specs=[
            pl.BlockSpec((tb, L), lambda j, i: (i, 0)),    # x tile (re-fetched per step, tiny)
            pl.BlockSpec((tf, L), lambda j, i: (j, 0)),    # embed tile, (F, L) layout kept
            pl.BlockSpec((2, tf), lambda j, i: (0, j)),    # [mean; std] window, per-F-block only
        ],
        out_specs=pl.BlockSpec((tb, tf), lambda j, i: (i, j)),
        compiler_params=pltpu.CompilerParams(
            dimension_semantics=("parallel", "parallel"),
            vmem_limit_bytes=vmem_limit,
        ),
        cost_estimate=cost,
    )(x, embed, ms)

    # VarEncoder(mode='feature'): batch-independent -> tiny (1, F) XLA op,
    # broadcast lazily (no redundant (B, F) HBM write unless a consumer forces it).
    v = jnp.nan_to_num(jnp.exp(var_param.reshape(1, F).astype(jnp.float32))) + var_eps
    y_v = jnp.broadcast_to(v, (B, F))
    return y_m, y_v


def decoder_lin_ref(x, embed, mean, std, var_param, *, var_eps: float = 1e-4):
    """Pure-JAX reference mirroring the PyTorch module."""
    y = x @ embed.T
    y_m = y * std.reshape(1, -1) + mean.reshape(1, -1)
    y_v = jnp.nan_to_num(jnp.exp(var_param.reshape(1, -1))) + var_eps
    y_v = jnp.broadcast_to(y_v, y.shape)
    return y_m, y_v


if __name__ == "__main__":
    B, n_latent, n_output = 8, 32, 128
    var_eps = 1e-4

    key = jax.random.PRNGKey(0)
    kx, ke, km, ks = jax.random.split(key, 4)
    x = jax.random.normal(kx, (B, n_latent), dtype=jnp.float32)
    embed = jax.random.normal(ke, (n_output, n_latent), dtype=jnp.float32)
    mean = jax.random.normal(km, (n_output,), dtype=jnp.float32)
    std = jax.nn.softplus(jax.random.normal(ks, (n_output,), dtype=jnp.float32))

    # Module parameter: VarEncoder(mode='feature') -> var_param = zeros(1, n_output)
    var_param = jnp.zeros((1, n_output), dtype=jnp.float32)

    y_m, y_v = decoder_lin_forward(x, embed, mean, std, var_param, var_eps=var_eps)
    jax.block_until_ready((y_m, y_v))

    y_m_ref, y_v_ref = decoder_lin_ref(x, embed, mean, std, var_param, var_eps=var_eps)
    assert jnp.allclose(y_m, y_m_ref, atol=1e-4, rtol=1e-4), "y_m mismatch"
    assert jnp.allclose(y_v, y_v_ref, atol=1e-6, rtol=1e-6), "y_v mismatch"

    print("KERNEL_OK")
</pallas_src>

<mosaic_0001>
module attributes {stable_mosaic.version = 11 : i64} {
  func.func @_decoder_lin_kernel(%arg0: i32, %arg1: i32, %arg2: memref<8x32xf32, #tpu.memory_space<vmem>>, %arg3: memref<128x32xf32, #tpu.memory_space<vmem>>, %arg4: memref<2x128xf32, #tpu.memory_space<vmem>>, %arg5: memref<8x128xf32, #tpu.memory_space<vmem>>) attributes {dimension_semantics = [#tpu.dimension_semantics<parallel>, #tpu.dimension_semantics<parallel>], iteration_bounds = array<i64: 1, 1>, scalar_prefetch = 0 : i64, scratch_operands = 0 : i64, tpu.core_type = #tpu.core_type<tc>, window_params = [{transform_indices = @transform_0, window_bounds = array<i64: 8, 32>}, {transform_indices = @transform_1, window_bounds = array<i64: 128, 32>}, {transform_indices = @transform_2, window_bounds = array<i64: 2, 128>}, {transform_indices = @transform_3, window_bounds = array<i64: 8, 128>}]} {
    %c0 = arith.constant 0 : index
    %c0_0 = arith.constant 0 : index
    %0 = vector.load %arg2[%c0, %c0_0] : memref<8x32xf32, #tpu.memory_space<vmem>>, vector<8x32xf32>
    %c0_1 = arith.constant 0 : index
    %c0_2 = arith.constant 0 : index
    %1 = vector.load %arg3[%c0_1, %c0_2] : memref<128x32xf32, #tpu.memory_space<vmem>>, vector<128x32xf32>
    %cst = arith.constant dense<0.000000e+00> : vector<8x128xf32>
    %2 = tpu.matmul %0, %1, %cst {dimension_numbers = #tpu.dot_dimension_numbers<[1], [1], [0], [0], [0, 0, 1, 0], [], []>} : vector<8x32xf32>, vector<128x32xf32>, vector<8x128xf32> -> vector<8x128xf32>
    %c0_3 = arith.constant 0 : index
    %c0_4 = arith.constant 0 : index
    %3 = vector.load %arg4[%c0_3, %c0_4] : memref<2x128xf32, #tpu.memory_space<vmem>>, vector<1x128xf32>
    %c1 = arith.constant 1 : index
    %c0_5 = arith.constant 0 : index
    %4 = vector.load %arg4[%c1, %c0_5] : memref<2x128xf32, #tpu.memory_space<vmem>>, vector<1x128xf32>
    %5 = vector.broadcast %4 : vector<1x128xf32> to vector<8x128xf32>
    %6 = arith.mulf %2, %5 : vector<8x128xf32>
    %7 = vector.broadcast %3 : vector<1x128xf32> to vector<8x128xf32>
    %8 = arith.addf %6, %7 : vector<8x128xf32>
    %c0_6 = arith.constant 0 : index
    %c0_7 = arith.constant 0 : index
    %9 = vector.load %arg5[%c0_6, %c0_7] : memref<8x128xf32, #tpu.memory_space<vmem>>, vector<8x128xf32>
    tpu.vector_store %arg5[%c0_6, %c0_7], %8 {strides = array<i32>} : memref<8x128xf32, #tpu.memory_space<vmem>>, vector<8x128xf32>,
    return
  }
  func.func @transform_0(%arg0: i32, %arg1: i32) -> (i32, i32) {
    %c0_i32 = arith.constant 0 : i32
    %c0_i32_0 = arith.constant 0 : i32
    return %arg1, %c0_i32 : i32, i32
  }
  func.func @transform_1(%arg0: i32, %arg1: i32) -> (i32, i32) {
    %c0_i32 = arith.constant 0 : i32
    %c0_i32_0 = arith.constant 0 : i32
    return %arg0, %c0_i32 : i32, i32
  }
  func.func @transform_2(%arg0: i32, %arg1: i32) -> (i32, i32) {
    %c0_i32 = arith.constant 0 : i32
    %c0_i32_0 = arith.constant 0 : i32
    return %c0_i32, %arg0 : i32, i32
  }
  func.func @transform_3(%arg0: i32, %arg1: i32) -> (i32, i32) {
    %c0_i32 = arith.constant 0 : i32
    return %arg1, %arg0 : i32, i32
  }
}

</mosaic_0001>

<llo_original>
// kernel: tpu_custom_call.1
$region0: #{tpu_custom_call.1}
  #allocation0 [shape = 'u32[]', space=smem, size = 0x4, offset = 0x4, fixed_abs, tag = 'smem constant byte address 0x4 - core index']
  #allocation1 [shape = 'u32[144,128]{1,0:T(1,128)}', space=vmem, size = 0x12000, scoped, tag = 'internal scratch']
  %s0 = inlined_call_operand.vmem [shape: f32[8,32], index: 0, kind: input, shape index: {}]
  %s1 = inlined_call_operand.vmem [shape: f32[128,32], index: 1, kind: input, shape index: {}]
  %s2 = inlined_call_operand.vmem [shape: f32[2,128], index: 2, kind: input, shape index: {}]
  %s3 = inlined_call_operand.hbm [shape: f32[8,128], index: 3, kind: output, shape index: {}]
  %s4 = sld [smem:[#allocation0]]
  $region22: #{tpu_custom_call.1} parent=0
    _
  %s6 = ssub.s32 1, %s4
  %s7 = scalar_select 0, %s6, %s4
  $region1: #{tpu_custom_call.1} parent=0
    #allocation2 [shape = 'u8[4096]{0}', space=vmem, size = 0x1000, scoped, tag = 'output window, operand 0, single buffered']
    #allocation3 [shape = 's32[1]{0}', space=sflag, size = 0x4, scoped, tag = 'scoped memory for tpu_custom_call.1']
    %8 = vsyncpa [#allocation3], 0
    // Predicated region
    $region2: #{tpu_custom_call.1} parent=1 // pred_check
      _
    $region3: #{tpu_custom_call.1} parent=1 // pred_check_branch
      %10 = sbr.rel (0) target = $region5
    $region4: #{tpu_custom_call.1} parent=1 // pred_region
      _
    $region5: #{tpu_custom_call.1} parent=1 // pred_fallthru
      _
    // Predicated region
    $region6: #{tpu_custom_call.1} parent=1 // pred_check
      _
    $region7: #{tpu_custom_call.1} parent=1 // pred_check_branch
      %12 = sbr.rel (0) target = $region9
    $region8: #{tpu_custom_call.1} parent=1 // pred_region
      _
    $region9: #{tpu_custom_call.1} parent=1 // pred_fallthru
      _
    // Predicated region
    $region10: #{tpu_custom_call.1} parent=1 // pred_check
      _
    $region11: #{tpu_custom_call.1} parent=1 // pred_check_branch
      %14 = sbr.rel (0) target = $region13
    $region12: #{tpu_custom_call.1} parent=1 // pred_region
      _
    $region13: #{tpu_custom_call.1} parent=1 // pred_fallthru
      _
    %v15 = vld [vmem:[%s0] sm:$0xff]
    %v16 = vld [vmem:[%s1] sm:$0xff]
    %v17 = vld [vmem:[%s1 + $0x8] sm:$0xff]
    %v18 = vld [vmem:[%s1 + $0x10] sm:$0xff]
    %v19 = vld [vmem:[%s1 + $0x18] sm:$0xff]
    %v20 = vld [vmem:[%s1 + $0x20] sm:$0xff]
    %v21 = vld [vmem:[%s1 + $0x28] sm:$0xff]
    %v22 = vld [vmem:[%s1 + $0x30] sm:$0xff]
    %v23 = vld [vmem:[%s1 + $0x38] sm:$0xff]
    %v24 = vld [vmem:[%s1 + $0x40] sm:$0xff]
    %v25 = vld [vmem:[%s1 + $0x48] sm:$0xff]
    %v26 = vld [vmem:[%s1 + $0x50] sm:$0xff]
    %v27 = vld [vmem:[%s1 + $0x58] sm:$0xff]
    %v28 = vld [vmem:[%s1 + $0x60] sm:$0xff]
    %v29 = vld [vmem:[%s1 + $0x68] sm:$0xff]
    %v30 = vld [vmem:[%s1 + $0x70] sm:$0xff]
    %v31 = vld [vmem:[%s1 + $0x78] sm:$0xff]
    %vm32 = vcmask 261120
    %v34 = vsel %vm32, %v15, 0
    %v37 = vsel %vm32, %v16, 0
    %v40 = vsel %vm32, %v17, 0
    %v43 = vsel %vm32, %v18, 0
    %v46 = vsel %vm32, %v19, 0
    %v49 = vsel %vm32, %v20, 0
    %v52 = vsel %vm32, %v21, 0
    %v55 = vsel %vm32, %v22, 0
    %v58 = vsel %vm32, %v23, 0
    %v61 = vsel %vm32, %v24, 0
    %v64 = vsel %vm32, %v25, 0
    %v67 = vsel %vm32, %v26, 0
    %v70 = vsel %vm32, %v27, 0
    %v73 = vsel %vm32, %v28, 0
    %v76 = vsel %vm32, %v29, 0
    %v79 = vsel %vm32, %v30, 0
    %v82 = vsel %vm32, %v31, 0
    %84 = vmatprep.subr.mxu0 0.0
    %85 = vmatpush1.xpose.msra.mxu0 %v82
    %86 = vmatprep.subr.mxu0 0.0
    %87 = vmatpush1.xpose.msra.mxu0 %v79
    %88 = vmatprep.subr.mxu0 0.0
    %89 = vmatpush1.xpose.msra.mxu0 %v76
    %90 = vmatprep.subr.mxu0 0.0
    %91 = vmatpush1.xpose.msra.mxu0 %v73
    %92 = vmatprep.subr.mxu0 0.0
    %93 = vmatpush1.xpose.msra.mxu0 %v70
    %94 = vmatprep.subr.mxu0 0.0
    %95 = vmatpush1.xpose.msra.mxu0 %v67
    %96 = vmatprep.subr.mxu0 0.0
    %97 = vmatpush1.xpose.msra.mxu0 %v64
    %98 = vmatprep.subr.mxu0 0.0
    %99 = vmatpush1.xpose.msra.mxu0 %v61
    %100 = vmatprep.subr.mxu0 0.0
    %101 = vmatpush1.xpose.msra.mxu0 %v58
    %102 = vmatprep.subr.mxu0 0.0
    %103 = vmatpush1.xpose.msra.mxu0 %v55
    %104 = vmatprep.subr.mxu0 0.0
    %105 = vmatpush1.xpose.msra.mxu0 %v52
    %106 = vmatprep.subr.mxu0 0.0
    %107 = vmatpush1.xpose.msra.mxu0 %v49
    %108 = vmatprep.subr.mxu0 0.0
    %109 = vmatpush1.xpose.msra.mxu0 %v46
    %110 = vmatprep.subr.mxu0 0.0
    %111 = vmatpush1.xpose.msra.mxu0 %v43
    %112 = vmatprep.subr.mxu0 0.0
    %113 = vmatpush1.xpose.msra.mxu0 %v40
    %114 = vmatprep.subr.mxu0 0.0
    %115 = vmatpush1.xpose.msra.mxu0 %v37
    %116 = vmatprep.subr.mxu0 0.0
    %117 = vmatpush2.xpose.msra.mxu0 0.0
    %118 = vmatprep.subr.mxu0 0.0
    %119 = vmatpush2.xpose.msra.mxu0 0.0
    %120 = vmatprep.subr.mxu0 0.0
    %121 = vmatpush2.xpose.msra.mxu0 0.0
    %122 = vmatprep.subr.mxu0 0.0
    %123 = vmatpush2.xpose.msra.mxu0 0.0
    %124 = vmatprep.subr.mxu0 0.0
    %125 = vmatpush2.xpose.msra.mxu0 0.0
    %126 = vmatprep.subr.mxu0 0.0
    %127 = vmatpush2.xpose.msra.mxu0 0.0
    %128 = vmatprep.subr.mxu0 0.0
    %129 = vmatpush2.xpose.msra.mxu0 0.0
    %130 = vmatprep.subr.mxu0 0.0
    %131 = vmatpush2.xpose.msra.mxu0 0.0
    %132 = vmatprep.subr.mxu0 0.0
    %133 = vmatpush2.xpose.msra.mxu0 0.0
    %134 = vmatprep.subr.mxu0 0.0
    %135 = vmatpush2.xpose.msra.mxu0 0.0
    %136 = vmatprep.subr.mxu0 0.0
    %137 = vmatpush2.xpose.msra.mxu0 0.0
    %138 = vmatprep.subr.mxu0 0.0
    %139 = vmatpush2.xpose.msra.mxu0 0.0
    %140 = vmatprep.subr.mxu0 0.0
    %141 = vmatpush2.xpose.msra.mxu0 0.0
    %142 = vmatprep.subr.mxu0 0.0
    %143 = vmatpush2.xpose.msra.mxu0 0.0
    %144 = vmatprep.subr.mxu0 0.0
    %145 = vmatpush2.xpose.msra.mxu0 0.0
    %146 = vmatprep.subr.mxu0 0.0
    %147 = vmatpush2.xpose.msra.mxu0 0.0
    %148 = vmatprep.mubr.f32.mxu0 0.0
    %149 = vmatmul.mubr.f32.gmra.mxu0 %v34
    %v150 = vpop.f32.mrf.mxu0
    %v151 = vadd.f32 0.0, %v150
    %v152 = vpop.f32.mrf.mxu0
    %153 = vdwg.mxu0
    %v154 = vld [vmem:[%s2] sm:$0x1]
    %v155 = vld [vmem:[%s2 + $0x1] sm:$0x1]
    %v156 = vlaneseq
    %v157 = vshrl.u32 %v156, 7
    %v158 = vsub.s32 0, %v157
    %v159 = vrot.slane %v155, %v158
    %v160 = vmul.f32 %v151, %v159
    %v161 = vlaneseq
    %v162 = vshrl.u32 %v161, 7
    %v163 = vsub.s32 0, %v162
    %v164 = vrot.slane %v154, %v163
    %v165 = vadd.f32 %v160, %v164
    %166 = vst [vmem:[#allocation2] sm:$0xff] %v165
    // Predicated region
    $region14: #{tpu_custom_call.1} parent=1 // pred_check
      _
    $region15: #{tpu_custom_call.1} parent=1 // pred_check_branch
      %168 = sbr.rel (0) target = $region17
    $region16: #{tpu_custom_call.1} parent=1 // pred_region
      %s170 = ssub.s32 128, 128
      %171 = vsyncadd [#allocation3], %s170
      %s173 = sshll.u32 [#allocation2], 4
      %s174 = int_to_ptr.vmem [resolvable:$true] %s173
      %176 = dma.vmem_to_hbm [thread:$0]  %s174, 128, %s3, [#allocation3]
    $region17: #{tpu_custom_call.1} parent=1 // pred_fallthru
      _
    // Predicated region
    $region18: #{tpu_custom_call.1} parent=1 // pred_check
      _
    $region19: #{tpu_custom_call.1} parent=1 // pred_check_branch
      %178 = sbr.rel (0) target = $region21
    $region20: #{tpu_custom_call.1} parent=1 // pred_region
      %179 = dma.done [#allocation3], 128
    $region21: #{tpu_custom_call.1} parent=1 // pred_fallthru
      _
    %180 = vsyncpa [#allocation3], 1

</llo_original>
